<compile_context>
chip_gen: v5e
topology: v5e:2x2
jax: 0.10.0
libtpu: 0.0.40
codegen_flags: <defaults>
</compile_context>

<pallas_src>
import math

import jax
import jax.numpy as jnp
from jax.experimental import pallas as pl
from jax.experimental.pallas import tpu as pltpu


def _patch_merging_kernel(x_ref, w_ref, o_ref):
    """x_ref: [tr, s, Wo, s*C]   w_ref: [s, s*C, tn]   o_ref: [tr*Wo, tn]."""
    tr, s, Wo, sC = x_ref.shape
    m = tr * Wo
    # One MXU pass per kernel row kh, each with M = tr*Wo rows (full MXU row
    # occupancy), accumulated in f32 registers.  The (tr, Wo, sC) -> (m, sC)
    # collapse is a layout no-op whenever Wo % 8 == 0 (true for every shape
    # exercised below; other Wo values may incur a cheap in-kernel relayout).
    # TODO(synk): for Wo % 8 != 0 stages, fall back to a per-row loop if the
    # collapse ever fails to lower on older Mosaic versions.
    acc = jnp.dot(x_ref[:, 0, :, :].reshape(m, sC), w_ref[0],
                  preferred_element_type=jnp.float32)
    for kh in range(1, s):
        acc = acc + jnp.dot(x_ref[:, kh, :, :].reshape(m, sC), w_ref[kh],
                            preferred_element_type=jnp.float32)
    # Single tile-wide cast + one unmasked, lane-dense store.
    o_ref[...] = acc.astype(o_ref.dtype)


def _vmem_capacity_bytes(default=64 * 1024 * 1024):
    """Physical VMEM per TensorCore; conservative default if the query fails."""
    try:
        info = pltpu.get_tpu_info()
        cap = int(getattr(info, "vmem_capacity_bytes", 0))
        if cap > 0:
            return cap
    except Exception:
        pass
    return default


def _choose_tiles(M_rows, Wo, s, sC, N, x_itemsize, w_itemsize, out_itemsize,
                  target_pixels, vmem_budget, row_tile=None):
    """Pick (tr, tn) = (# downsampled rows per tile, out-channel tile width)."""
    # Keep the whole weight resident in VMEM unless it is genuinely large
    # (all Swin stages fit easily: the largest weight is ~2.4 MiB in bf16).
    full_w_bytes = s * sC * N * w_itemsize
    if 2 * full_w_bytes <= 8 * 1024 * 1024 or N % 128 != 0:
        tn = N
    elif N % 512 == 0:
        tn = 512
    elif N % 256 == 0:
        tn = 256
    else:
        tn = 128

    def working_set(tr_):
        xb = tr_ * s * Wo * sC * x_itemsize     # activation tile
        wb = s * sC * tn * w_itemsize           # weight tile
        ob = tr_ * Wo * tn * out_itemsize       # output tile
        return 2 * (xb + wb + ob)               # default double buffering

    if row_tile is not None:
        tr = max(1, min(int(row_tile), M_rows))
    else:
        tr = max(1, min(M_rows, pl.cdiv(target_pixels, max(Wo, 1))))
        # Keep >= 4 row tiles so a megacore split of the row axis still gives
        # each TensorCore >= 2 pipelined steps.
        tr = max(1, min(tr, pl.cdiv(M_rows, 4)))
        while tr > 1 and working_set(tr) > vmem_budget:
            tr = (tr + 1) // 2
    if tr < M_rows:
        # (8, 128) block rule: the output block's sublane dim is tr*Wo.
        step = 8 // math.gcd(Wo, 8)
        tr = max(step, (tr // step) * step)
    return tr, tn, working_set(tr)


def patch_merging_forward(x, hw_shape, weight, stride=2, *,
                          cast_weight_to_input_dtype=True,
                          target_pixels=8192, row_tile=None):
    """
    x:        [B, H*W, C]
    hw_shape: (H, W)
    weight:   [stride*stride*C, out_channels]  (transpose of the PyTorch
              nn.Linear weight [out, in]); bias=False, norm_layer=None.
    Returns (y, down_hw_shape) with y: [B, L', out_channels].
    """
    B, L, C = x.shape
    H, W = hw_shape
    assert L == H * W, "input feature has wrong size"
    s = stride
    sample_dim, N = weight.shape
    assert sample_dim == s * s * C

    # [B, H*W, C] -> [B, H, W, C]; replicate F.pad(x, (0, W % s, 0, H % s)).
    x = x.reshape(B, H, W, C)
    pad_h, pad_w = H % s, W % s
    if pad_h or pad_w:
        x = jnp.pad(x, ((0, 0), (0, pad_h), (0, pad_w), (0, 0)))
    Hp, Wp = H + pad_h, W + pad_w
    # nn.Unfold(kernel=s, stride=s) keeps floor((dim - s)/s) + 1 windows.
    Ho, Wo = (Hp - s) // s + 1, (Wp - s) // s + 1
    if Ho * s != Hp or Wo * s != Wp:
        x = x[:, : Ho * s, : Wo * s, :]

    # Free (contiguous) reshape exposing nn.Unfold's structure:
    #   x4[b*Ho + ho, kh, wo, kw*C + c] == x[b, ho*s + kh, wo*s + kw, c]
    sC = s * C
    M_rows = B * Ho
    x4 = x.reshape(M_rows, s, Wo, sC)

    # Per-kh weight blocks matching x4's lane layout (channel-major unfold):
    #   w_k[kh, kw*C + c, n] == weight[c*s*s + kh*s + kw, n]
    w_k = jnp.transpose(weight.reshape(C, s, s, N), (1, 2, 0, 3)).reshape(s, sC, N)
    if cast_weight_to_input_dtype:
        # bf16 path halves weight HBM traffic; note this differs slightly from
        # the f32-weight PyTorch module numerics (explicit opt-out available).
        w_k = w_k.astype(x4.dtype)

    x_itemsize = x4.dtype.itemsize
    w_itemsize = w_k.dtype.itemsize
    out_dtype = x4.dtype
    out_itemsize = out_dtype.itemsize

    vmem_cap = _vmem_capacity_bytes()
    tr, tn, working_set = _choose_tiles(
        M_rows, Wo, s, sC, N, x_itemsize, w_itemsize, out_itemsize,
        target_pixels=target_pixels, vmem_budget=vmem_cap // 2,
        row_tile=row_tile)
    ni, nj = pl.cdiv(M_rows, tr), N // tn

    flops = 2 * M_rows * Wo * (s * sC) * N
    weight_bytes = w_k.size * w_itemsize
    weight_traffic = weight_bytes * (ni if nj > 1 else 1)
    bytes_accessed = (x4.size * x_itemsize + weight_traffic
                      + M_rows * Wo * N * out_itemsize)
    vmem_limit = int(min(3 * vmem_cap // 4,
                         max(32 * 1024 * 1024, 3 * working_set // 2)))

    if nj == 1:
        # Weight fully resident: DMA'd from HBM exactly once; 1-D grid.
        grid = (ni,)
        in_specs = [
            # Activation tile: one fully contiguous HBM chunk per step.
            pl.BlockSpec((tr, s, Wo, sC), lambda i: (i, 0, 0, 0)),
            pl.BlockSpec((s, sC, N), lambda i: (0, 0, 0)),
        ]
        out_specs = pl.BlockSpec((tr * Wo, N), lambda i: (i, 0))
        dim_sem = ("parallel",)
    else:
        grid = (ni, nj)
        in_specs = [
            pl.BlockSpec((tr, s, Wo, sC), lambda i, j: (i, 0, 0, 0)),
            pl.BlockSpec((s, sC, tn), lambda i, j: (0, 0, j)),
        ]
        out_specs = pl.BlockSpec((tr * Wo, tn), lambda i, j: (i, j))
        # "arbitrary" keeps any megacore split off the out-channel axis, so
        # the two cores never redundantly stream the same activations.
        dim_sem = ("parallel", "arbitrary")

    # TODO(synk): if norm_layer were provided, fuse the LayerNorm over the
    # sample_dim features into this kernel before the reduction matmuls.
    out = pl.pallas_call(
        _patch_merging_kernel,
        out_shape=jax.ShapeDtypeStruct((M_rows * Wo, N), out_dtype),
        grid_spec=pltpu.PrefetchScalarGridSpec(
            num_scalar_prefetch=0, grid=grid,
            in_specs=in_specs, out_specs=out_specs),
        compiler_params=pltpu.CompilerParams(
            dimension_semantics=dim_sem,
            vmem_limit_bytes=vmem_limit),
        cost_estimate=pl.CostEstimate(
            flops=flops, transcendentals=0, bytes_accessed=bytes_accessed),
    )(x4, w_k)

    y = out.reshape(B, Ho * Wo, N)
    # Mirrors the PyTorch module, which hardcodes // 2 regardless of `stride`.
    down_hw_shape = ((H + 1) // 2, (W + 1) // 2)
    return y, down_hw_shape


if __name__ == "__main__":
    # Small config consistent with the module: in_channels=4, out_channels=8,
    # stride=2, B=2, H=W=16  ->  x: [2, 256, 4].
    B, H, W = 2, 16, 16
    in_channels, out_channels, stride = 4, 8, 2
    sample_dim = stride * stride * in_channels

    key = jax.random.PRNGKey(0)
    kx, kw = jax.random.split(key)
    x = jax.random.normal(kx, (B, H * W, in_channels), dtype=jnp.float32)
    # nn.Linear(sample_dim, out_channels, bias=False).weight is [out, in];
    # pass its transpose so the kernel computes x_unfold @ W^T.
    w_pt = jax.random.normal(kw, (out_channels, sample_dim), dtype=jnp.float32) * 0.1
    w = jnp.transpose(w_pt)  # [sample_dim, out_channels]

    # Pure-JAX reference of the same forward (unfold + linear), f32.
    xr = x.reshape(B, H, W, in_channels)
    xr = xr.reshape(B, H // 2, 2, W // 2, 2, in_channels)
    xr = jnp.transpose(xr, (0, 1, 3, 5, 2, 4)).reshape(
        B, (H // 2) * (W // 2), sample_dim)
    y_ref = xr @ w

    # 1) Default tiling.
    y, down_hw = patch_merging_forward(x, (H, W), w, stride=stride)
    y = jax.block_until_ready(y)
    assert y.shape == (B, (H // 2) * (W // 2), out_channels)
    assert down_hw == ((H + 1) // 2, (W + 1) // 2)
    assert jnp.allclose(y, y_ref, atol=1e-4, rtol=1e-4)

    # 2) Forced small row tile -> exercises a partial last block
    #    (M_rows = 16, tr = 3 -> grid of 6 with a ragged tail).
    y_part, _ = patch_merging_forward(x, (H, W), w, stride=stride, row_tile=3)
    y_part = jax.block_until_ready(y_part)
    assert jnp.allclose(y_part, y_ref, atol=1e-4, rtol=1e-4)

    # 3) bf16 activations/weights (f32 accumulation in-kernel): halves HBM
    #    traffic on real Swin stages; checked loosely against the f32 ref.
    y_bf16, _ = patch_merging_forward(
        x.astype(jnp.bfloat16), (H, W), w.astype(jnp.bfloat16), stride=stride)
    y_bf16 = jax.block_until_ready(y_bf16)
    assert jnp.allclose(y_bf16.astype(jnp.float32), y_ref, atol=5e-2, rtol=5e-2)

    print("KERNEL_OK")
</pallas_src>

<mosaic_0001>
module attributes {stable_mosaic.version = 11 : i64} {
  func.func @_patch_merging_kernel(%arg0: i32, %arg1: memref<4x2x8x8xf32, #tpu.memory_space<vmem>>, %arg2: memref<2x8x8xf32, #tpu.memory_space<vmem>>, %arg3: memref<32x8xf32, #tpu.memory_space<vmem>>) attributes {dimension_semantics = [#tpu.dimension_semantics<parallel>], iteration_bounds = array<i64: 4>, scalar_prefetch = 0 : i64, scratch_operands = 0 : i64, tpu.core_type = #tpu.core_type<tc>, window_params = [{transform_indices = @transform_0, window_bounds = array<i64: 4, 2, 8, 8>}, {pipeline_mode = #tpu.pipeline_mode<synchronous>, transform_indices = @transform_1, window_bounds = array<i64: 2, 8, 8>}, {transform_indices = @transform_2, window_bounds = array<i64: 32, 8>}]} {
    %c0 = arith.constant 0 : index
    %c0_0 = arith.constant 0 : index
    %c0_1 = arith.constant 0 : index
    %c0_2 = arith.constant 0 : index
    %0 = vector.load %arg1[%c0, %c0_0, %c0_1, %c0_2] : memref<4x2x8x8xf32, #tpu.memory_space<vmem>>, vector<4x1x8x8xf32>
    %1 = vector.shape_cast %0 : vector<4x1x8x8xf32> to vector<4x8x8xf32>
    %2 = vector.shape_cast %1 : vector<4x8x8xf32> to vector<32x8xf32>
    %c0_3 = arith.constant 0 : index
    %c0_4 = arith.constant 0 : index
    %c0_5 = arith.constant 0 : index
    %3 = vector.load %arg2[%c0_3, %c0_4, %c0_5] : memref<2x8x8xf32, #tpu.memory_space<vmem>>, vector<1x8x8xf32>
    %4 = vector.shape_cast %3 : vector<1x8x8xf32> to vector<8x8xf32>
    %cst = arith.constant dense<0.000000e+00> : vector<32x8xf32>
    %5 = tpu.matmul %2, %4, %cst {dimension_numbers = #tpu.dot_dimension_numbers<[1], [0], [0], [1], [0, 0, 1, 1], [], []>} : vector<32x8xf32>, vector<8x8xf32>, vector<32x8xf32> -> vector<32x8xf32>
    %c0_6 = arith.constant 0 : index
    %c1 = arith.constant 1 : index
    %c0_7 = arith.constant 0 : index
    %c0_8 = arith.constant 0 : index
    %6 = vector.load %arg1[%c0_6, %c1, %c0_7, %c0_8] : memref<4x2x8x8xf32, #tpu.memory_space<vmem>>, vector<4x1x8x8xf32>
    %7 = vector.shape_cast %6 : vector<4x1x8x8xf32> to vector<4x8x8xf32>
    %8 = vector.shape_cast %7 : vector<4x8x8xf32> to vector<32x8xf32>
    %c1_9 = arith.constant 1 : index
    %c0_10 = arith.constant 0 : index
    %c0_11 = arith.constant 0 : index
    %9 = vector.load %arg2[%c1_9, %c0_10, %c0_11] : memref<2x8x8xf32, #tpu.memory_space<vmem>>, vector<1x8x8xf32>
    %10 = vector.shape_cast %9 : vector<1x8x8xf32> to vector<8x8xf32>
    %cst_12 = arith.constant dense<0.000000e+00> : vector<32x8xf32>
    %11 = tpu.matmul %8, %10, %cst_12 {dimension_numbers = #tpu.dot_dimension_numbers<[1], [0], [0], [1], [0, 0, 1, 1], [], []>} : vector<32x8xf32>, vector<8x8xf32>, vector<32x8xf32> -> vector<32x8xf32>
    %12 = arith.addf %5, %11 : vector<32x8xf32>
    %c0_13 = arith.constant 0 : index
    %c0_14 = arith.constant 0 : index
    %13 = vector.load %arg3[%c0_13, %c0_14] : memref<32x8xf32, #tpu.memory_space<vmem>>, vector<32x8xf32>
    tpu.vector_store %arg3[%c0_13, %c0_14], %12 {strides = array<i32>} : memref<32x8xf32, #tpu.memory_space<vmem>>, vector<32x8xf32>,
    return
  }
  func.func @transform_0(%arg0: i32) -> (i32, i32, i32, i32) {
    %c0_i32 = arith.constant 0 : i32
    %c0_i32_0 = arith.constant 0 : i32
    %c0_i32_1 = arith.constant 0 : i32
    %c0_i32_2 = arith.constant 0 : i32
    return %arg0, %c0_i32, %c0_i32_0, %c0_i32_1 : i32, i32, i32, i32
  }
  func.func @transform_1(%arg0: i32) -> (i32, i32, i32) {
    %c0_i32 = arith.constant 0 : i32
    %c0_i32_0 = arith.constant 0 : i32
    %c0_i32_1 = arith.constant 0 : i32
    %c0_i32_2 = arith.constant 0 : i32
    return %c0_i32, %c0_i32_0, %c0_i32_1 : i32, i32, i32
  }
  func.func @transform_2(%arg0: i32) -> (i32, i32) {
    %c0_i32 = arith.constant 0 : i32
    %c0_i32_0 = arith.constant 0 : i32
    return %arg0, %c0_i32 : i32, i32
  }
}

</mosaic_0001>

<llo_original>
// kernel: tpu_custom_call.1
$region0: #{tpu_custom_call.1}
  #allocation0 [shape = 'u32[]', space=smem, size = 0x4, offset = 0x4, fixed_abs, tag = 'smem constant byte address 0x4 - core index']
  #allocation1 [shape = 'u32[72,128]{1,0:T(1,128)}', space=vmem, size = 0x9000, scoped, tag = 'internal scratch']
  %s0 = inlined_call_operand.vmem [shape: f32[16,2,8,8], index: 0, kind: input, shape index: {}]
  %s1 = inlined_call_operand.vmem [shape: f32[2,8,8], index: 1, kind: input, shape index: {}]
  %s2 = inlined_call_operand.vmem [shape: f32[128,8], index: 2, kind: output, shape index: {}]
  %s3 = sld [smem:[#allocation0]]
  $region41: #{tpu_custom_call.1} parent=0
    _
  %s5 = ssub.s32 1, %s3
  %s6 = scalar_select 0, %s5, %s3
  loop: start=0, step=1, limit=6
  $region2: #{tpu_custom_call.1} parent=0 // loop_pre_header
    _
  $region3: #{tpu_custom_call.1} parent=0 // loop_header
    %s8 = sphi 0, %s12
    %p9 = scmp.ge.s32.totalorder %s8, 6
    %s18 = sphi 0, %s20
    %s21 = sphi 0, %s18
    %s22 = sphi 0, %s21
    %s38 = sphi 0, %s22
    %s42 = sphi 0, %s42
    %s44 = sphi 0, %s42
    %s45 = sphi 0, %s44
    %s59 = sphi 0, %s45
    %s65 = sphi 0, %s67
    %s68 = sphi 0, %s65
    %s69 = sphi 0, %s68
    %s85 = sphi 0, %s69
  $region4: #{tpu_custom_call.1} parent=0 // loop_header_branch
    %11 = sbr.rel (%p9) target = $region8
  $region5: #{tpu_custom_call.1} parent=0 // loop_body
    %s13 = ssub.s32 %s8, 1
    %s14 = ssub.s32 %s8, 2
    %s15 = sadd.s32 %s8, 1
    %s16 = ssub.s32 %s8, %s15
    %p17 = scmp.eq.s32.totalorder %s16, 0
    %s19 = sadd.s32 %s18, 1
    %s20 = scalar_select %p17, %s18, %s19
    %p23 = pneg %p17
    %p24 = scmp.eq.s32.totalorder %s8, 3
    %p25 = por %p23, %p24
    %p26 = scmp.ne.s32.totalorder %s18, %s21
    %p27 = scmp.eq.s32.totalorder %s8, 0
    %p28 = por %p26, %p27
    %p29 = scmp.ne.s32.totalorder %s18, %s21
    %p30 = scmp.eq.s32.totalorder %s13, 3
    %p31 = por %p29, %p30
    %p32 = scmp.ne.s32.totalorder %s21, %s22
    %p33 = scmp.eq.s32.totalorder %s13, 0
    %p34 = por %p32, %p33
    %p35 = scmp.ne.s32.totalorder %s21, %s22
    %p36 = scmp.eq.s32.totalorder %s14, 3
    %p37 = por %p35, %p36
    %p39 = scmp.ne.s32.totalorder %s22, %s38
    %p40 = scmp.eq.s32.totalorder %s14, 0
    %p41 = por %p39, %p40
    %s43 = sadd.s32 %s42, 1
    %p46 = scmp.eq.s32.totalorder %s8, 3
    %p47 = scmp.ne.s32.totalorder %s42, %s44
    %p48 = scmp.eq.s32.totalorder %s8, 0
    %p49 = por %p47, %p48
    %p50 = scmp.ne.s32.totalorder %s42, %s44
    %p51 = scmp.eq.s32.totalorder %s13, 3
    %p52 = por %p50, %p51
    %p53 = scmp.ne.s32.totalorder %s44, %s45
    %p54 = scmp.eq.s32.totalorder %s13, 0
    %p55 = por %p53, %p54
    %p56 = scmp.ne.s32.totalorder %s44, %s45
    %p57 = scmp.eq.s32.totalorder %s14, 3
    %p58 = por %p56, %p57
    %p60 = scmp.ne.s32.totalorder %s45, %s59
    %p61 = scmp.eq.s32.totalorder %s14, 0
    %p62 = por %p60, %p61
    %s63 = ssub.s32 %s8, %s15
    %p64 = scmp.eq.s32.totalorder %s63, 0
    %s66 = sadd.s32 %s65, 1
    %s67 = scalar_select %p64, %s65, %s66
    %p70 = pneg %p64
    %p71 = scmp.eq.s32.totalorder %s8, 3
    %p72 = por %p70, %p71
    %p73 = scmp.ne.s32.totalorder %s65, %s68
    %p74 = scmp.eq.s32.totalorder %s8, 0
    %p75 = por %p73, %p74
    %p76 = scmp.ne.s32.totalorder %s65, %s68
    %p77 = scmp.eq.s32.totalorder %s13, 3
    %p78 = por %p76, %p77
    %p79 = scmp.ne.s32.totalorder %s68, %s69
    %p80 = scmp.eq.s32.totalorder %s13, 0
    %p81 = por %p79, %p80
    %p82 = scmp.ne.s32.totalorder %s68, %s69
    %p83 = scmp.eq.s32.totalorder %s14, 3
    %p84 = por %p82, %p83
    %p86 = scmp.ne.s32.totalorder %s69, %s85
    %p87 = scmp.eq.s32.totalorder %s14, 0
    %p88 = por %p86, %p87
    %p89 = scmp.le.s32.totalorder 1, %s8
    %p90 = scmp.lt.s32.totalorder %s8, 5
    %p91 = pnand %p89, %p90
    %p92 = pneg %p91
    // Predicated region
    $region9: #{tpu_custom_call.1} parent=5 // pred_check
      _
    $region10: #{tpu_custom_call.1} parent=5 // pred_check_branch
      %94 = sbr.rel (%p91) target = $region12
    $region11: #{tpu_custom_call.1} parent=5 // pred_region
      %s95 = ssub.s32 %s8, 1
      // Predicated region
      $region13: #{tpu_custom_call.1} parent=11 // pred_check
        %p96 = pneg %p55
      $region14: #{tpu_custom_call.1} parent=11 // pred_check_branch
        %98 = sbr.rel (%p96) target = $region16
      $region15: #{tpu_custom_call.1} parent=11 // pred_region
        _
      $region16: #{tpu_custom_call.1} parent=11 // pred_fallthru
        _
    $region12: #{tpu_custom_call.1} parent=5 // pred_fallthru
      _
    %p99 = scmp.lt.s32.totalorder %s8, 4
    // Predicated region
    $region17: #{tpu_custom_call.1} parent=5 // pred_check
      %p100 = pneg %p99
    $region18: #{tpu_custom_call.1} parent=5 // pred_check_branch
      %102 = sbr.rel (%p100) target = $region20
    $region19: #{tpu_custom_call.1} parent=5 // pred_region
      // Predicated region
      $region21: #{tpu_custom_call.1} parent=19 // pred_check
        %p103 = pneg %p28
      $region22: #{tpu_custom_call.1} parent=19 // pred_check_branch
        %105 = sbr.rel (%p103) target = $region24
      $region23: #{tpu_custom_call.1} parent=19 // pred_region
        %s106 = smul.u32 4, %s8
        %p107 = scmp.lt.s32.totalorder %s106, 15
        %s108 = scalar_select %p107, %s106, 15
        %s109 = smul.addr %s108, 2
        %s110 = smul.addr %s109, 8
        %s111 = scalar_lea.vmem %s0, %s110
        %s112 = smul.u32 4, %s8
      $region24: #{tpu_custom_call.1} parent=19 // pred_fallthru
        _
    $region20: #{tpu_custom_call.1} parent=5 // pred_fallthru
      _
    %p113 = scmp.le.s32.totalorder 1, %s8
    %p114 = scmp.lt.s32.totalorder %s8, 5
    %p115 = pnand %p113, %p114
    %p116 = pneg %p115
    // Predicated region
    $region25: #{tpu_custom_call.1} parent=5 // pred_check
      _
    $region26: #{tpu_custom_call.1} parent=5 // pred_check_branch
      %118 = sbr.rel (%p115) target = $region28
    $region27: #{tpu_custom_call.1} parent=5 // pred_region
      %s119 = ssub.s32 %s8, 1
      %s120 = smul.u32 4, %s13
      %p121 = scmp.lt.s32.totalorder %s120, 15
      %s122 = scalar_select %p121, %s120, 15
      %s123 = smul.addr %s122, 2
      %s124 = smul.addr %s123, 8
      %s125 = scalar_lea.vmem %s0, %s124
      %p126 = pneg %p34
      %p127 = pneg %p31
      %p128 = pneg %p55
      %p129 = pneg %p52
      %p130 = pneg %p81
      %p131 = pneg %p78
      %s132 = smul.u32 4, %s13
      %p133 = scmp.lt.s32.totalorder %s132, 15
      %s134 = scalar_select %p133, %s132, 15
      %s135 = smul.addr %s134, 8
      %s136 = scalar_lea.vmem %s2, %s135
      %s137 = smul.u32 4, %s13
      %p138 = scmp.lt.s32.totalorder %s137, 15
      %s139 = scalar_select %p138, %s137, 15
      %s140 = smul.addr %s139, 2
      %s141 = smul.addr %s140, 8
      %s142 = scalar_lea.vmem %s0, %s141
      %s143 = smul.u32 4, %s13
      %s144 = smul.u32 4, %s13
      %p145 = scmp.lt.s32.totalorder %s144, 15
      %s146 = scalar_select %p145, %s144, 15
      %s147 = smul.addr %s146, 8
      %s148 = scalar_lea.vmem %s2, %s147
      %s149 = smul.u32 4, %s13
      %v150 = vld [vmem:[%s142] sm:$0xff]
      %v151 = vld [vmem:[%s142 + $0x10] sm:$0xff]
      %v152 = vld [vmem:[%s142 + $0x20] sm:$0xff]
      %v153 = vld [vmem:[%s142 + $0x30] sm:$0xff]
      %v154 = vld [vmem:[%s1] sm:$0xff]
      %s155 = scalar_lea.vmem %s142, 8
      %v156 = vld [vmem:[%s155] sm:$0xff]
      %v157 = vld [vmem:[%s155 + $0x10] sm:$0xff]
      %v158 = vld [vmem:[%s155 + $0x20] sm:$0xff]
      %v159 = vld [vmem:[%s155 + $0x30] sm:$0xff]
      %s160 = scalar_lea.vmem %s1, 8
      %v161 = vld [vmem:[%s160] sm:$0xff]
      %vm162 = vcmask 64512
      %v164 = vsel %vm162, %v156, 0
      %v167 = vsel %vm162, %v157, 0
      %v170 = vsel %vm162, %v158, 0
      %v173 = vsel %vm162, %v159, 0
      %175 = vmatpush.msra.mxu0 0.0
      %176 = vmatpush.msra.mxu0 0.0
      %177 = vmatpush.msra.mxu0 0.0
      %178 = vmatpush.msra.mxu0 0.0
      %179 = vmatpush.msra.mxu0 0.0
      %180 = vmatpush.msra.mxu0 0.0
      %181 = vmatpush.msra.mxu0 0.0
      %182 = vmatpush.msra.mxu0 0.0
      %183 = vmatpush.msra.mxu0 0.0
      %184 = vmatpush.msra.mxu0 0.0
      %185 = vmatpush.msra.mxu0 0.0
      %186 = vmatpush.msra.mxu0 0.0
      %187 = vmatpush.msra.mxu0 0.0
      %188 = vmatpush.msra.mxu0 0.0
      %189 = vmatpush.msra.mxu0 0.0
      %190 = vmatpush.msra.mxu0 %v161
      %191 = vmatmul.f32.gmra.mxu0 %v164
      %v192 = vpop.f32.mrf.mxu0
      %v193 = vadd.f32 0.0, %v192
      %194 = vmatmul.f32.gmra.mxu0 %v167
      %v195 = vpop.f32.mrf.mxu0
      %v196 = vadd.f32 0.0, %v195
      %197 = vmatmul.f32.gmra.mxu0 %v170
      %v198 = vpop.f32.mrf.mxu0
      %v199 = vadd.f32 0.0, %v198
      %200 = vmatmul.f32.gmra.mxu0 %v173
      %v201 = vpop.f32.mrf.mxu0
      %v202 = vadd.f32 0.0, %v201
      %203 = vdwg.mxu0
      %v205 = vsel %vm162, %v150, 0
      %v208 = vsel %vm162, %v151, 0
      %v211 = vsel %vm162, %v152, 0
      %v214 = vsel %vm162, %v153, 0
      %216 = vmatpush.msra.mxu0 0.0
      %217 = vmatpush.msra.mxu0 0.0
      %218 = vmatpush.msra.mxu0 0.0
      %219 = vmatpush.msra.mxu0 0.0
      %220 = vmatpush.msra.mxu0 0.0
      %221 = vmatpush.msra.mxu0 0.0
      %222 = vmatpush.msra.mxu0 0.0
      %223 = vmatpush.msra.mxu0 0.0
      %224 = vmatpush.msra.mxu0 0.0
      %225 = vmatpush.msra.mxu0 0.0
      %226 = vmatpush.msra.mxu0 0.0
      %227 = vmatpush.msra.mxu0 0.0
      %228 = vmatpush.msra.mxu0 0.0
      %229 = vmatpush.msra.mxu0 0.0
      %230 = vmatpush.msra.mxu0 0.0
      %231 = vmatpush.msra.mxu0 %v154
      %232 = vmatmul.f32.gmra.mxu0 %v205
      %v233 = vpop.f32.mrf.mxu0
      %v234 = vadd.f32 %v193, %v233
      %235 = vmatmul.f32.gmra.mxu0 %v208
      %v236 = vpop.f32.mrf.mxu0
      %v237 = vadd.f32 %v196, %v236
      %238 = vmatmul.f32.gmra.mxu0 %v211
      %v239 = vpop.f32.mrf.mxu0
      %v240 = vadd.f32 %v199, %v239
      %241 = vmatmul.f32.gmra.mxu0 %v214
      %v242 = vpop.f32.mrf.mxu0
      %v243 = vadd.f32 %v202, %v242
      %244 = vdwg.mxu0
      %245 = vst.msk [vmem:[%s148] sm:$0xff] %vm162, %v234
      %246 = vst.msk [vmem:[%s148 + $0x8] sm:$0xff] %vm162, %v237
      %247 = vst.msk [vmem:[%s148 + $0x10] sm:$0xff] %vm162, %v240
      %248 = vst.msk [vmem:[%s148 + $0x18] sm:$0xff] %vm162, %v243
      %s249 = smul.u32 4, %s13
      %p250 = scmp.lt.s32.totalorder %s249, 15
      %s251 = scalar_select %p250, %s249, 15
      %s252 = smul.addr %s251, 8
      %s253 = scalar_lea.vmem %s2, %s252
      // Predicated region
      $region29: #{tpu_custom_call.1} parent=27 // pred_check
        %p254 = pneg %p78
      $region30: #{tpu_custom_call.1} parent=27 // pred_check_branch
        %256 = sbr.rel (%p254) target = $region32
      $region31: #{tpu_custom_call.1} parent=27 // pred_region
        %s257 = smul.u32 4, %s13
      $region32: #{tpu_custom_call.1} parent=27 // pred_fallthru
        _
    $region28: #{tpu_custom_call.1} parent=5 // pred_fallthru
      _
    %p258 = scmp.le.s32.totalorder 2, %s8
    // Predicated region
    $region33: #{tpu_custom_call.1} parent=5 // pred_check
      %p259 = pneg %p258
    $region34: #{tpu_custom_call.1} parent=5 // pred_check_branch
      %261 = sbr.rel (%p259) target = $region36
    $region35: #{tpu_custom_call.1} parent=5 // pred_region
      %s262 = ssub.s32 %s8, 2
      // Predicated region
      $region37: #{tpu_custom_call.1} parent=35 // pred_check
        %p263 = pneg %p84
      $region38: #{tpu_custom_call.1} parent=35 // pred_check_branch
        %265 = sbr.rel (%p263) target = $region40
      $region39: #{tpu_custom_call.1} parent=35 // pred_region
        %s266 = smul.u32 4, %s14
        %p267 = scmp.lt.s32.totalorder %s266, 15
        %s268 = scalar_select %p267, %s266, 15
        %s269 = smul.addr %s268, 8
        %s270 = scalar_lea.vmem %s2, %s269
      $region40: #{tpu_custom_call.1} parent=35 // pred_fallthru
        _
    $region36: #{tpu_custom_call.1} parent=5 // pred_fallthru
      _
  $region6: #{tpu_custom_call.1} parent=0 // loop_footer
    %s12 = sadd.s32 1, %s8
  $region7: #{tpu_custom_call.1} parent=0 // loop_footer_branch
    %7 = sbr.rel target = $region3
  $region8: #{tpu_custom_call.1} parent=0 // loop_exit
    _

</llo_original>
